<compile_context>
chip_gen: v7x
topology: tpu7x:2x2x1
jax: 0.10.0
libtpu: 0.0.40
codegen_flags: <defaults>
</compile_context>

<pallas_src>
import functools

import jax
import jax.numpy as jnp
from jax.experimental import pallas as pl
from jax.experimental.pallas import tpu as pltpu


def _round_up(x: int, m: int) -> int:
    return ((x + m - 1) // m) * m


# --------------------- per-generation tile plan ---------------------

def _vmem_capacity_bytes() -> int:
    try:
        info = pltpu.get_tpu_info()
        cap = getattr(info, "vmem_capacity_bytes", None)
        if cap:
            return int(cap)
    except Exception:
        pass
    try:
        kind = jax.devices()[0].device_kind.lower()
    except Exception:
        kind = ""
    if ("v4" in kind) or ("v5" in kind) or ("v6" in kind):
        return 128 << 20
    # Conservative default (v7x-class: 64 MiB per TensorCore).
    return 64 << 20


def _tile_plan(dtype):
    """(row_tile, inter_tile, vmem_limit_bytes) for the current TPU generation."""
    cap = _vmem_capacity_bytes()
    itemsize = jnp.dtype(dtype).itemsize
    if cap >= (100 << 20):              # v5e / v6e: 128 MiB physical VMEM
        row_tile, inter_tile, limit = 1024, 512, 100 << 20
    else:                               # v7x-class: 64 MiB per TensorCore
        row_tile, inter_tile, limit = 512, 512, 60 << 20
    if itemsize >= 4:                   # f32 blocks are 2x bigger
        row_tile //= 2
        inter_tile //= 2
    return row_tile, inter_tile, limit


# ------------------------------ kernel ------------------------------

def _ffn_kernel(x_ref, wgu_ref, wd_ref, o_ref, acc_ref):
    """Grid = (M tiles, I tiles); axis 1 (intermediate dim) is the reduction."""
    k = pl.program_id(1)

    @pl.when(k == 0)
    def _():
        acc_ref[...] = jnp.zeros_like(acc_ref)

    tk = wd_ref.shape[0]
    x = x_ref[...]
    # Fused gate+up projection: one MXU pass over the [H, 2*tk] weight tile.
    gu = jnp.dot(x, wgu_ref[...], preferred_element_type=jnp.float32)
    g = gu[:, :tk]
    u = gu[:, tk:]
    # SwiGLU: silu(g) * u.  sigmoid runs on the EUP slot (free vs VALU/MXU).
    h = (g * jax.nn.sigmoid(g)) * u
    # Partial down projection accumulated in f32 VMEM scratch.
    acc_ref[...] += jnp.dot(h.astype(x_ref.dtype), wd_ref[...],
                            preferred_element_type=jnp.float32)

    @pl.when(k == pl.num_programs(1) - 1)
    def _():
        o_ref[...] = acc_ref[...].astype(o_ref.dtype)


# ------------------------------ wrapper ------------------------------

@functools.partial(jax.jit,
                   static_argnames=("row_tile", "inter_tile", "vmem_limit_bytes"))
def _llama_ffn(x, wg, wu, wd, *, row_tile, inter_tile, vmem_limit_bytes):
    """x: [B, S, H]; wg/wu: [H, I]; wd: [I, H] -> [B, S, H]."""
    B, S, H = x.shape
    Hw, I = wg.shape
    assert Hw == H and wu.shape == (H, I) and wd.shape == (I, H)

    M = B * S
    x2 = x.reshape(M, H)
    itemsize = jnp.dtype(x.dtype).itemsize

    # ---- M (row) tile: 128-aligned and balanced across tiles. ----
    if M <= row_tile:
        tm = _round_up(M, 128)
    else:
        n_m = -(-M // row_tile)
        tm = _round_up(-(-M // n_m), 128)

    # ---- I (intermediate) tile: multiple of 128. ----
    tk = _round_up(min(inter_tile, _round_up(I, 128)), 128)

    # ---- VMEM-budget guard: shrink tiles if the plan would not fit. ----
    def _vmem_est(tm_, tk_):
        return (2 * tm_ * H * itemsize          # x (double-buffered)
                + 2 * H * 2 * tk_ * itemsize    # fused gate+up weight tile
                + 2 * tk_ * H * itemsize        # down weight tile
                + 2 * tm_ * H * itemsize        # output tile
                + tm_ * H * 4                   # f32 accumulator
                + tm_ * 3 * tk_ * 4)            # in-kernel f32 temporaries

    budget = int(0.9 * vmem_limit_bytes)
    while _vmem_est(tm, tk) > budget and max(tm, tk) > 128:
        if tm >= tk:
            tm = _round_up(max(128, tm // 2), 128)
        else:
            tk = _round_up(max(128, tk // 2), 128)

    # ---- Exact zero padding of rows and intermediate dim. ----
    Mp = _round_up(M, tm)
    if Mp != M:
        x2 = jnp.pad(x2, ((0, Mp - M), (0, 0)))
    Ip = _round_up(I, tk)
    nk = Ip // tk
    if Ip != I:
        wg = jnp.pad(wg, ((0, 0), (0, Ip - I)))
        wu = jnp.pad(wu, ((0, 0), (0, Ip - I)))
        wd = jnp.pad(wd, ((0, Ip - I), (0, 0)))

    # Block-contiguous fused gate+up weight [nk, H, 2*tk] and down weight
    # [nk, tk, H].  (In a real model this packing is done once at load time.)
    wgu = jnp.concatenate(
        [wg.reshape(H, nk, tk).transpose(1, 0, 2),
         wu.reshape(H, nk, tk).transpose(1, 0, 2)], axis=-1)
    wdb = wd.reshape(nk, tk, H)

    grid = (Mp // tm, nk)
    cost = pl.CostEstimate(
        flops=6 * M * H * I,
        transcendentals=M * I,
        # Weights are re-read once per M tile.
        bytes_accessed=(2 * Mp * H + (Mp // tm) * 3 * H * Ip) * itemsize,
    )

    out2 = pl.pallas_call(
        _ffn_kernel,
        out_shape=jax.ShapeDtypeStruct((Mp, H), x.dtype),
        grid_spec=pltpu.PrefetchScalarGridSpec(
            num_scalar_prefetch=0,
            grid=grid,
            in_specs=[
                # x rows: constant along the I axis -> fetched once per M tile.
                pl.BlockSpec((tm, H), lambda i, k: (i, 0)),
                # fused gate+up weight tile (leading block axis squeezed).
                pl.BlockSpec((None, H, 2 * tk), lambda i, k: (k, 0, 0)),
                # down weight tile.
                pl.BlockSpec((None, tk, H), lambda i, k: (k, 0, 0)),
            ],
            # Output block is constant along the I (reduction) axis.
            out_specs=pl.BlockSpec((tm, H), lambda i, k: (i, 0)),
            scratch_shapes=[pltpu.VMEM((tm, H), jnp.float32)],
        ),
        compiler_params=pltpu.CompilerParams(
            dimension_semantics=("parallel", "arbitrary"),
            vmem_limit_bytes=vmem_limit_bytes,
        ),
        cost_estimate=cost,
    )(x2, wgu, wdb)

    if Mp != M:
        out2 = out2[:M]
    return out2.reshape(B, S, H)


def llama_feed_forward(x, wg, wu, wd, *, row_tile=None, inter_tile=None,
                       vmem_limit_bytes=None, compute_dtype=None):
    """Public entry point.  Tile plan auto-selected per TPU generation.

    compute_dtype: optionally run the matmuls in a lower precision (e.g. pass
    jnp.bfloat16 on v5e, whose MXU has no native f32 path); accumulation stays
    f32 and the output is cast back to x.dtype.
    """
    out_dtype = x.dtype
    if compute_dtype is not None and compute_dtype != x.dtype:
        x = x.astype(compute_dtype)
        wg = wg.astype(compute_dtype)
        wu = wu.astype(compute_dtype)
        wd = wd.astype(compute_dtype)
    p_row, p_inter, p_vmem = _tile_plan(x.dtype)
    out = _llama_ffn(
        x, wg, wu, wd,
        row_tile=int(row_tile or p_row),
        inter_tile=int(inter_tile or p_inter),
        vmem_limit_bytes=int(vmem_limit_bytes or p_vmem),
    )
    return out.astype(out_dtype)


# ------------------------------ testing ------------------------------

def _reference(x, wg, wu, wd):
    g = x @ wg
    u = x @ wu
    return (jax.nn.silu(g) * u) @ wd


def _make_inputs(key, batch, seq, hidden, inter, dtype):
    kx, kg, ku, kd = jax.random.split(key, 4)
    x = jax.random.normal(kx, (batch, seq, hidden), dtype=dtype)
    # deterministic "init_weights": stored as [in, out] (transposed vs torch)
    wg = (jax.random.normal(kg, (hidden, inter), dtype=dtype)
          * (hidden ** -0.5)).astype(dtype)
    wu = (jax.random.normal(ku, (hidden, inter), dtype=dtype)
          * (hidden ** -0.5)).astype(dtype)
    wd = (jax.random.normal(kd, (inter, hidden), dtype=dtype)
          * (inter ** -0.5)).astype(dtype)
    return x, wg, wu, wd


if __name__ == "__main__":
    key = jax.random.PRNGKey(0)
    k1, k2, k3 = jax.random.split(key, 3)

    # Case 1: small, evenly divisible shapes (single grid step).
    x, wg, wu, wd = _make_inputs(k1, batch=2, seq=8, hidden=128,
                                 inter=256, dtype=jnp.float32)
    out = jax.block_until_ready(llama_feed_forward(x, wg, wu, wd))
    ref = _reference(x, wg, wu, wd)
    assert out.shape == x.shape
    assert jnp.allclose(out, ref, atol=2e-3, rtol=2e-3), "mismatch (case 1)"

    # Case 2: exercises row padding (M=10 -> 128) and I padding (320 -> 512).
    x, wg, wu, wd = _make_inputs(k2, batch=2, seq=5, hidden=128,
                                 inter=320, dtype=jnp.float32)
    out = jax.block_until_ready(llama_feed_forward(x, wg, wu, wd))
    ref = _reference(x, wg, wu, wd)
    assert out.shape == x.shape
    assert jnp.allclose(out, ref, atol=2e-3, rtol=2e-3), "mismatch (case 2)"

    # Case 3: explicit small tiles -> multiple M tiles and multiple I tiles
    # (exercises the accumulator / balanced-tm / packed-weight paths).
    x, wg, wu, wd = _make_inputs(k3, batch=3, seq=64, hidden=256,
                                 inter=384, dtype=jnp.float32)
    out = jax.block_until_ready(
        llama_feed_forward(x, wg, wu, wd, row_tile=128, inter_tile=128))
    ref = _reference(x, wg, wu, wd)
    assert out.shape == x.shape
    assert jnp.allclose(out, ref, atol=2e-3, rtol=2e-3), "mismatch (case 3)"

    print("KERNEL_OK")
</pallas_src>

<mosaic_0001>
module attributes {stable_mosaic.version = 11 : i64} {
  func.func @_ffn_kernel(%arg0: i32, %arg1: i32, %arg2: memref<128x128xf32, #tpu.memory_space<vmem>>, %arg3: memref<1x128x512xf32, #tpu.memory_space<vmem>>, %arg4: memref<1x256x128xf32, #tpu.memory_space<vmem>>, %arg5: memref<128x128xf32, #tpu.memory_space<vmem>>, %arg6: memref<128x128xf32, #tpu.memory_space<vmem>>) attributes {dimension_semantics = [#tpu.dimension_semantics<parallel>, #tpu.dimension_semantics<arbitrary>], iteration_bounds = array<i64: 1, 1>, scalar_prefetch = 0 : i64, scratch_operands = 1 : i64, tpu.core_type = #tpu.core_type<tc>, window_params = [{transform_indices = @transform_0, window_bounds = array<i64: 128, 128>}, {transform_indices = @transform_1, window_bounds = array<i64: 1, 128, 512>}, {transform_indices = @transform_2, window_bounds = array<i64: 1, 256, 128>}, {transform_indices = @transform_3, window_bounds = array<i64: 128, 128>}]} {
    %c0_i32 = arith.constant 0 : i32
    %0 = arith.cmpi eq, %arg1, %c0_i32 : i32
    %1 = arith.extui %0 : i1 to i32
    %c0_i32_0 = arith.constant 0 : i32
    %2 = arith.cmpi ne, %1, %c0_i32_0 : i32
    scf.if %2 {
      %cst_16 = arith.constant 0.000000e+00 : f32
      %25 = vector.broadcast %cst_16 : f32 to vector<128x128xf32>
      %c0_17 = arith.constant 0 : index
      %c0_18 = arith.constant 0 : index
      %26 = vector.load %arg6[%c0_17, %c0_18] : memref<128x128xf32, #tpu.memory_space<vmem>>, vector<128x128xf32>
      tpu.vector_store %arg6[%c0_17, %c0_18], %25 {strides = array<i32>} : memref<128x128xf32, #tpu.memory_space<vmem>>, vector<128x128xf32>,
    } else {
    }
    %c0 = arith.constant 0 : index
    %c0_1 = arith.constant 0 : index
    %3 = vector.load %arg2[%c0, %c0_1] : memref<128x128xf32, #tpu.memory_space<vmem>>, vector<128x128xf32>
    %c0_2 = arith.constant 0 : index
    %c0_3 = arith.constant 0 : index
    %c0_4 = arith.constant 0 : index
    %4 = vector.load %arg3[%c0_2, %c0_3, %c0_4] : memref<1x128x512xf32, #tpu.memory_space<vmem>>, vector<1x128x512xf32>
    %5 = vector.shape_cast %4 : vector<1x128x512xf32> to vector<128x512xf32>
    %cst = arith.constant dense<0.000000e+00> : vector<128x512xf32>
    %6 = tpu.matmul %3, %5, %cst {dimension_numbers = #tpu.dot_dimension_numbers<[1], [0], [0], [1], [0, 0, 1, 1], [], []>} : vector<128x128xf32>, vector<128x512xf32>, vector<128x512xf32> -> vector<128x512xf32>
    %7 = vector.extract_strided_slice %6 {offsets = [0, 0], sizes = [128, 256], strides = [1, 1]} : vector<128x512xf32> to vector<128x256xf32>
    %8 = vector.extract_strided_slice %6 {offsets = [0, 256], sizes = [128, 256], strides = [1, 1]} : vector<128x512xf32> to vector<128x256xf32>
    %9 = arith.negf %7 : vector<128x256xf32>
    %10 = math.exp %9 : vector<128x256xf32>
    %cst_5 = arith.constant 1.000000e+00 : f32
    %11 = vector.broadcast %cst_5 : f32 to vector<128x256xf32>
    %12 = arith.addf %11, %10 : vector<128x256xf32>
    %13 = arith.divf %11, %12 : vector<128x256xf32>
    %14 = arith.mulf %7, %13 : vector<128x256xf32>
    %15 = arith.mulf %14, %8 : vector<128x256xf32>
    %c0_6 = arith.constant 0 : index
    %c0_7 = arith.constant 0 : index
    %16 = vector.load %arg6[%c0_6, %c0_7] : memref<128x128xf32, #tpu.memory_space<vmem>>, vector<128x128xf32>
    %c0_8 = arith.constant 0 : index
    %c0_9 = arith.constant 0 : index
    %c0_10 = arith.constant 0 : index
    %17 = vector.load %arg4[%c0_8, %c0_9, %c0_10] : memref<1x256x128xf32, #tpu.memory_space<vmem>>, vector<1x256x128xf32>
    %18 = vector.shape_cast %17 : vector<1x256x128xf32> to vector<256x128xf32>
    %cst_11 = arith.constant dense<0.000000e+00> : vector<128x128xf32>
    %19 = tpu.matmul %15, %18, %cst_11 {dimension_numbers = #tpu.dot_dimension_numbers<[1], [0], [0], [1], [0, 0, 1, 1], [], []>} : vector<128x256xf32>, vector<256x128xf32>, vector<128x128xf32> -> vector<128x128xf32>
    %20 = arith.addf %16, %19 : vector<128x128xf32>
    %c0_12 = arith.constant 0 : index
    %c0_13 = arith.constant 0 : index
    %21 = vector.load %arg6[%c0_12, %c0_13] : memref<128x128xf32, #tpu.memory_space<vmem>>, vector<128x128xf32>
    tpu.vector_store %arg6[%c0_12, %c0_13], %20 {strides = array<i32>} : memref<128x128xf32, #tpu.memory_space<vmem>>, vector<128x128xf32>,
    %c0_i32_14 = arith.constant 0 : i32
    %22 = arith.cmpi eq, %arg1, %c0_i32_14 : i32
    %23 = arith.extui %22 : i1 to i32
    %c0_i32_15 = arith.constant 0 : i32
    %24 = arith.cmpi ne, %23, %c0_i32_15 : i32
    scf.if %24 {
      %c0_16 = arith.constant 0 : index
      %c0_17 = arith.constant 0 : index
      %25 = vector.load %arg6[%c0_16, %c0_17] : memref<128x128xf32, #tpu.memory_space<vmem>>, vector<128x128xf32>
      %c0_18 = arith.constant 0 : index
      %c0_19 = arith.constant 0 : index
      %26 = vector.load %arg5[%c0_18, %c0_19] : memref<128x128xf32, #tpu.memory_space<vmem>>, vector<128x128xf32>
      tpu.vector_store %arg5[%c0_18, %c0_19], %25 {strides = array<i32>} : memref<128x128xf32, #tpu.memory_space<vmem>>, vector<128x128xf32>,
    } else {
    }
    return
  }
  func.func @transform_0(%arg0: i32, %arg1: i32) -> (i32, i32) {
    %c0_i32 = arith.constant 0 : i32
    %c0_i32_0 = arith.constant 0 : i32
    return %arg0, %c0_i32 : i32, i32
  }
  func.func @transform_1(%arg0: i32, %arg1: i32) -> (i32, i32, i32) {
    %c0_i32 = arith.constant 0 : i32
    %c0_i32_0 = arith.constant 0 : i32
    %c0_i32_1 = arith.constant 0 : i32
    return %arg1, %c0_i32, %c0_i32_0 : i32, i32, i32
  }
  func.func @transform_2(%arg0: i32, %arg1: i32) -> (i32, i32, i32) {
    %c0_i32 = arith.constant 0 : i32
    %c0_i32_0 = arith.constant 0 : i32
    %c0_i32_1 = arith.constant 0 : i32
    return %arg1, %c0_i32, %c0_i32_0 : i32, i32, i32
  }
  func.func @transform_3(%arg0: i32, %arg1: i32) -> (i32, i32) {
    %c0_i32 = arith.constant 0 : i32
    %c0_i32_0 = arith.constant 0 : i32
    return %arg0, %c0_i32 : i32, i32
  }
}

</mosaic_0001>

<llo_original>
// kernel: _llama_ffn.1
$region0: #{_llama_ffn.1}
  #allocation0 [shape = 'u32[]', space=smem, size = 0x4, offset = 0x4, fixed_abs, tag = 'smem constant byte address 0x4 - core index']
  #allocation1 [shape = 'u32[144,128]{1,0:T(1,128)}', space=vmem, size = 0x12000, scoped, tag = 'internal scratch']
  #allocation2 [shape = 'f32[128,128]{1,0:T(8,128)}', space=vmem, size = 0x10000, scoped, tag = 'scratch operand']
  %s0 = inlined_call_operand.vmem [shape: f32[128,128], index: 0, kind: input, shape index: {}]
  %s1 = inlined_call_operand.vmem [shape: f32[1,128,512], index: 1, kind: input, shape index: {}]
  %s2 = inlined_call_operand.vmem [shape: f32[1,256,128], index: 2, kind: input, shape index: {}]
  %s3 = inlined_call_operand.vmem [shape: f32[128,128], index: 3, kind: output, shape index: {}]
  %s4 = sld [smem:[#allocation0]]
  $region30: #{_llama_ffn.1} parent=0
    _
  %s6 = ssub.s32 1, %s4
  %s7 = scalar_select 0, %s6, %s4
  // Predicated region
  $region2: #{_llama_ffn.1} parent=0 // pred_check
    _
  $region3: #{_llama_ffn.1} parent=0 // pred_check_branch
    %9 = sbr.rel (0) target = $region5
  $region4: #{_llama_ffn.1} parent=0 // pred_region
    _
  $region5: #{_llama_ffn.1} parent=0 // pred_fallthru
    _
  // Predicated region
  $region6: #{_llama_ffn.1} parent=0 // pred_check
    _
  $region7: #{_llama_ffn.1} parent=0 // pred_check_branch
    %11 = sbr.rel (0) target = $region9
  $region8: #{_llama_ffn.1} parent=0 // pred_region
    _
  $region9: #{_llama_ffn.1} parent=0 // pred_fallthru
    _
  // Predicated region
  $region10: #{_llama_ffn.1} parent=0 // pred_check
    _
  $region11: #{_llama_ffn.1} parent=0 // pred_check_branch
    %13 = sbr.rel (0) target = $region13
  $region12: #{_llama_ffn.1} parent=0 // pred_region
    _
  $region13: #{_llama_ffn.1} parent=0 // pred_fallthru
    _
  %p14 = scmp.eq.s32.totalorder 0, 0
  // Predicated region
  $region14: #{_llama_ffn.1} parent=0 // pred_check
    %p15 = pneg %p14
  $region15: #{_llama_ffn.1} parent=0 // pred_check_branch
    %17 = sbr.rel (%p15) target = $region17
  $region16: #{_llama_ffn.1} parent=0 // pred_region
    %18 = vst [vmem:[#allocation2] sm:$0xff] 0.0
    %19 = vst [vmem:[#allocation2 + $0x8] sm:$0xff] 0.0
    %20 = vst [vmem:[#allocation2 + $0x10] sm:$0xff] 0.0
    %21 = vst [vmem:[#allocation2 + $0x18] sm:$0xff] 0.0
    %22 = vst [vmem:[#allocation2 + $0x20] sm:$0xff] 0.0
    %23 = vst [vmem:[#allocation2 + $0x28] sm:$0xff] 0.0
    %24 = vst [vmem:[#allocation2 + $0x30] sm:$0xff] 0.0
    %25 = vst [vmem:[#allocation2 + $0x38] sm:$0xff] 0.0
    %26 = vst [vmem:[#allocation2 + $0x40] sm:$0xff] 0.0
    %27 = vst [vmem:[#allocation2 + $0x48] sm:$0xff] 0.0
    %28 = vst [vmem:[#allocation2 + $0x50] sm:$0xff] 0.0
    %29 = vst [vmem:[#allocation2 + $0x58] sm:$0xff] 0.0
    %30 = vst [vmem:[#allocation2 + $0x60] sm:$0xff] 0.0
    %31 = vst [vmem:[#allocation2 + $0x68] sm:$0xff] 0.0
    %32 = vst [vmem:[#allocation2 + $0x70] sm:$0xff] 0.0
    %33 = vst [vmem:[#allocation2 + $0x78] sm:$0xff] 0.0
  $region17: #{_llama_ffn.1} parent=0 // pred_fallthru
    _
  %v34 = vld [vmem:[%s0] sm:$0xff]
  %v35 = vld [vmem:[%s0 + $0x8] sm:$0xff]
  %v36 = vld [vmem:[%s0 + $0x10] sm:$0xff]
  %v37 = vld [vmem:[%s0 + $0x18] sm:$0xff]
  %v38 = vld [vmem:[%s0 + $0x20] sm:$0xff]
  %v39 = vld [vmem:[%s0 + $0x28] sm:$0xff]
  %v40 = vld [vmem:[%s0 + $0x30] sm:$0xff]
  %v41 = vld [vmem:[%s0 + $0x38] sm:$0xff]
  %v42 = vld [vmem:[%s0 + $0x40] sm:$0xff]
  %v43 = vld [vmem:[%s0 + $0x48] sm:$0xff]
  %v44 = vld [vmem:[%s0 + $0x50] sm:$0xff]
  %v45 = vld [vmem:[%s0 + $0x58] sm:$0xff]
  %v46 = vld [vmem:[%s0 + $0x60] sm:$0xff]
  %v47 = vld [vmem:[%s0 + $0x68] sm:$0xff]
  %v48 = vld [vmem:[%s0 + $0x70] sm:$0xff]
  %v49 = vld [vmem:[%s0 + $0x78] sm:$0xff]
  %v50 = vld [vmem:[%s1] sm:$0xff]
  %v51 = vld [vmem:[%s1 + $0x8] sm:$0xff]
  %v52 = vld [vmem:[%s1 + $0x10] sm:$0xff]
  %v53 = vld [vmem:[%s1 + $0x18] sm:$0xff]
  %v54 = vld [vmem:[%s1 + $0x20] sm:$0xff]
  %v55 = vld [vmem:[%s1 + $0x28] sm:$0xff]
  %v56 = vld [vmem:[%s1 + $0x30] sm:$0xff]
  %v57 = vld [vmem:[%s1 + $0x38] sm:$0xff]
  %v58 = vld [vmem:[%s1 + $0x40] sm:$0xff]
  %v59 = vld [vmem:[%s1 + $0x48] sm:$0xff]
  %v60 = vld [vmem:[%s1 + $0x50] sm:$0xff]
  %v61 = vld [vmem:[%s1 + $0x58] sm:$0xff]
  %v62 = vld [vmem:[%s1 + $0x60] sm:$0xff]
  %v63 = vld [vmem:[%s1 + $0x68] sm:$0xff]
  %v64 = vld [vmem:[%s1 + $0x70] sm:$0xff]
  %v65 = vld [vmem:[%s1 + $0x78] sm:$0xff]
  %v66 = vld [vmem:[%s1 + $0x80] sm:$0xff]
  %v67 = vld [vmem:[%s1 + $0x88] sm:$0xff]
  %v68 = vld [vmem:[%s1 + $0x90] sm:$0xff]
  %v69 = vld [vmem:[%s1 + $0x98] sm:$0xff]
  %v70 = vld [vmem:[%s1 + $0xa0] sm:$0xff]
  %v71 = vld [vmem:[%s1 + $0xa8] sm:$0xff]
  %v72 = vld [vmem:[%s1 + $0xb0] sm:$0xff]
  %v73 = vld [vmem:[%s1 + $0xb8] sm:$0xff]
  %v74 = vld [vmem:[%s1 + $0xc0] sm:$0xff]
  %v75 = vld [vmem:[%s1 + $0xc8] sm:$0xff]
  %v76 = vld [vmem:[%s1 + $0xd0] sm:$0xff]
  %v77 = vld [vmem:[%s1 + $0xd8] sm:$0xff]
  %v78 = vld [vmem:[%s1 + $0xe0] sm:$0xff]
  %v79 = vld [vmem:[%s1 + $0xe8] sm:$0xff]
  %v80 = vld [vmem:[%s1 + $0xf0] sm:$0xff]
  %v81 = vld [vmem:[%s1 + $0xf8] sm:$0xff]
  %v82 = vld [vmem:[%s1 + $0x100] sm:$0xff]
  %v83 = vld [vmem:[%s1 + $0x108] sm:$0xff]
  %v84 = vld [vmem:[%s1 + $0x110] sm:$0xff]
  %v85 = vld [vmem:[%s1 + $0x118] sm:$0xff]
  %v86 = vld [vmem:[%s1 + $0x120] sm:$0xff]
  %v87 = vld [vmem:[%s1 + $0x128] sm:$0xff]
  %v88 = vld [vmem:[%s1 + $0x130] sm:$0xff]
  %v89 = vld [vmem:[%s1 + $0x138] sm:$0xff]
  %v90 = vld [vmem:[%s1 + $0x140] sm:$0xff]
  %v91 = vld [vmem:[%s1 + $0x148] sm:$0xff]
  %v92 = vld [vmem:[%s1 + $0x150] sm:$0xff]
  %v93 = vld [vmem:[%s1 + $0x158] sm:$0xff]
  %v94 = vld [vmem:[%s1 + $0x160] sm:$0xff]
  %v95 = vld [vmem:[%s1 + $0x168] sm:$0xff]
  %v96 = vld [vmem:[%s1 + $0x170] sm:$0xff]
  %v97 = vld [vmem:[%s1 + $0x178] sm:$0xff]
  %v98 = vld [vmem:[%s1 + $0x180] sm:$0xff]
  %v99 = vld [vmem:[%s1 + $0x188] sm:$0xff]
  %v100 = vld [vmem:[%s1 + $0x190] sm:$0xff]
  %v101 = vld [vmem:[%s1 + $0x198] sm:$0xff]
  %v102 = vld [vmem:[%s1 + $0x1a0] sm:$0xff]
  %v103 = vld [vmem:[%s1 + $0x1a8] sm:$0xff]
  %v104 = vld [vmem:[%s1 + $0x1b0] sm:$0xff]
  %v105 = vld [vmem:[%s1 + $0x1b8] sm:$0xff]
  %v106 = vld [vmem:[%s1 + $0x1c0] sm:$0xff]
  %v107 = vld [vmem:[%s1 + $0x1c8] sm:$0xff]
  %v108 = vld [vmem:[%s1 + $0x1d0] sm:$0xff]
  %v109 = vld [vmem:[%s1 + $0x1d8] sm:$0xff]
  %v110 = vld [vmem:[%s1 + $0x1e0] sm:$0xff]
  %v111 = vld [vmem:[%s1 + $0x1e8] sm:$0xff]
  %v112 = vld [vmem:[%s1 + $0x1f0] sm:$0xff]
  %v113 = vld [vmem:[%s1 + $0x1f8] sm:$0xff]
  %114 = vmatprep.subr.mxu0 %v51
  %115 = vmatpush1.msra.mxu0 %v50
  %116 = vmatprep.subr.mxu0 %v55
  %117 = vmatpush1.msra.mxu0 %v54
  %118 = vmatprep.subr.mxu0 %v59
  %119 = vmatpush1.msra.mxu0 %v58
  %120 = vmatprep.subr.mxu0 %v63
  %121 = vmatpush1.msra.mxu0 %v62
  %122 = vmatprep.subr.mxu0 %v67
  %123 = vmatpush1.msra.mxu0 %v66
  %124 = vmatprep.subr.mxu0 %v71
  %125 = vmatpush1.msra.mxu0 %v70
  %126 = vmatprep.subr.mxu0 %v75
  %127 = vmatpush1.msra.mxu0 %v74
  %128 = vmatprep.subr.mxu0 %v79
  %129 = vmatpush1.msra.mxu0 %v78
  %130 = vmatprep.subr.mxu0 %v83
  %131 = vmatpush1.msra.mxu0 %v82
  %132 = vmatprep.subr.mxu0 %v87
  %133 = vmatpush1.msra.mxu0 %v86
  %134 = vmatprep.subr.mxu0 %v91
  %135 = vmatpush1.msra.mxu0 %v90
  %136 = vmatprep.subr.mxu0 %v95
  %137 = vmatpush1.msra.mxu0 %v94
  %138 = vmatprep.subr.mxu0 %v99
  %139 = vmatpush1.msra.mxu0 %v98
  %140 = vmatprep.subr.mxu0 %v103
  %141 = vmatpush1.msra.mxu0 %v102
  %142 = vmatprep.subr.mxu0 %v107
  %143 = vmatpush1.msra.mxu0 %v106
  %144 = vmatprep.subr.mxu0 %v111
  %145 = vmatpush1.msra.mxu0 %v110
  %146 = vmatprep.subr.mxu0 0.0
  %147 = vmatpush1.msra.mxu0 0.0
  %148 = vmatprep.subr.mxu0 0.0
  %149 = vmatpush1.msra.mxu0 0.0
  %150 = vmatprep.subr.mxu0 0.0
  %151 = vmatpush1.msra.mxu0 0.0
  %152 = vmatprep.subr.mxu0 0.0
  %153 = vmatpush1.msra.mxu0 0.0
  %154 = vmatprep.subr.mxu0 0.0
  %155 = vmatpush1.msra.mxu0 0.0
  %156 = vmatprep.subr.mxu0 0.0
  %157 = vmatpush1.msra.mxu0 0.0
  %158 = vmatprep.subr.mxu0 0.0
  %159 = vmatpush1.msra.mxu0 0.0
  %160 = vmatprep.subr.mxu0 0.0
  %161 = vmatpush1.msra.mxu0 0.0
  %162 = vmatprep.subr.mxu0 0.0
  %163 = vmatpush1.msra.mxu0 0.0
  %164 = vmatprep.subr.mxu0 0.0
  %165 = vmatpush1.msra.mxu0 0.0
  %166 = vmatprep.subr.mxu0 0.0
  %167 = vmatpush1.msra.mxu0 0.0
  %168 = vmatprep.subr.mxu0 0.0
  %169 = vmatpush1.msra.mxu0 0.0
  %170 = vmatprep.subr.mxu0 0.0
  %171 = vmatpush1.msra.mxu0 0.0
  %172 = vmatprep.subr.mxu0 0.0
  %173 = vmatpush1.msra.mxu0 0.0
  %174 = vmatprep.subr.mxu0 0.0
  %175 = vmatpush1.msra.mxu0 0.0
  %176 = vmatprep.subr.mxu0 0.0
  %177 = vmatpush1.msra.mxu0 0.0
  %178 = vmatprep.mubr.f32.mxu0 0.0
  %179 = vmatmul.mubr.f32.gmra.mrb[0].mxu0 %v34
  %v180 = vpop.f32.mrb[0].mxu0
  %v181 = vadd.f32 0.0, %v180
  %v182 = vpop.f32.mrb[0].mxu0
  %v183 = vadd.f32 0.0, %v182
  %184 = vmatprep.mubr.f32.mxu0 0.0
  %185 = vmatmul.mubr.f32.gmra.mrb[0].mxu0 %v35
  %v186 = vpop.f32.mrb[0].mxu0
  %v187 = vadd.f32 0.0, %v186
  %v188 = vpop.f32.mrb[0].mxu0
  %v189 = vadd.f32 0.0, %v188
  %190 = vmatprep.mubr.f32.mxu0 0.0
  %191 = vmatmul.mubr.f32.gmra.mrb[0].mxu0 %v36
  %v192 = vpop.f32.mrb[0].mxu0
  %v193 = vadd.f32 0.0, %v192
  %v194 = vpop.f32.mrb[0].mxu0
  %v195 = vadd.f32 0.0, %v194
  %196 = vmatprep.mubr.f32.mxu0 0.0
  %197 = vmatmul.mubr.f32.gmra.mrb[0].mxu0 %v37
  %v198 = vpop.f32.mrb[0].mxu0
  %v199 = vadd.f32 0.0, %v198
  %v200 = vpop.f32.mrb[0].mxu0
  %v201 = vadd.f32 0.0, %v200
  %202 = vmatprep.mubr.f32.mxu0 0.0
  %203 = vmatmul.mubr.f32.gmra.mrb[0].mxu0 %v38
  %v204 = vpop.f32.mrb[0].mxu0
  %v205 = vadd.f32 0.0, %v204
  %v206 = vpop.f32.mrb[0].mxu0
  %v207 = vadd.f32 0.0, %v206
  %208 = vmatprep.mubr.f32.mxu0 0.0
  %209 = vmatmul.mubr.f32.gmra.mrb[0].mxu0 %v39
  %v210 = vpop.f32.mrb[0].mxu0
  %v211 = vadd.f32 0.0, %v210
  %v212 = vpop.f32.mrb[0].mxu0
  %v213 = vadd.f32 0.0, %v212
  %214 = vmatprep.mubr.f32.mxu0 0.0
  %215 = vmatmul.mubr.f32.gmra.mrb[0].mxu0 %v40
  %v216 = vpop.f32.mrb[0].mxu0
  %v217 = vadd.f32 0.0, %v216
  %v218 = vpop.f32.mrb[0].mxu0
  %v219 = vadd.f32 0.0, %v218
  %220 = vmatprep.mubr.f32.mxu0 0.0
  %221 = vmatmul.mubr.f32.gmra.mrb[0].mxu0 %v41
  %v222 = vpop.f32.mrb[0].mxu0
  %v223 = vadd.f32 0.0, %v222
  %v224 = vpop.f32.mrb[0].mxu0
  %v225 = vadd.f32 0.0, %v224
  %226 = vmatprep.mubr.f32.mxu0 0.0
  %227 = vmatmul.mubr.f32.gmra.mrb[0].mxu0 %v42
  %v228 = vpop.f32.mrb[0].mxu0
  %v229 = vadd.f32 0.0, %v228
  %v230 = vpop.f32.mrb[0].mxu0
  %v231 = vadd.f32 0.0, %v230
  %232 = vmatprep.mubr.f32.mxu0 0.0
  %233 = vmatmul.mubr.f32.gmra.mrb[0].mxu0 %v43
  %v234 = vpop.f32.mrb[0].mxu0
  %v235 = vadd.f32 0.0, %v234
  %v236 = vpop.f32.mrb[0].mxu0
  %v237 = vadd.f32 0.0, %v236
  %238 = vmatprep.mubr.f32.mxu0 0.0
  %239 = vmatmul.mubr.f32.gmra.mrb[0].mxu0 %v44
  %v240 = vpop.f32.mrb[0].mxu0
  %v241 = vadd.f32 0.0, %v240
  %v242 = vpop.f32.mrb[0].mxu0
  %v243 = vadd.f32 0.0, %v242
  %244 = vmatprep.mubr.f32.mxu0 0.0
  %245 = vmatmul.mubr.f32.gmra.mrb[0].mxu0 %v45
  %v246 = vpop.f32.mrb[0].mxu0
  %v247 = vadd.f32 0.0, %v246
  %v248 = vpop.f32.mrb[0].mxu0
  %v249 = vadd.f32 0.0, %v248
  %250 = vmatprep.mubr.f32.mxu0 0.0
  %251 = vmatmul.mubr.f32.gmra.mrb[0].mxu0 %v46
  %v252 = vpop.f32.mrb[0].mxu0
  %v253 = vadd.f32 0.0, %v252
  %v254 = vpop.f32.mrb[0].mxu0
  %v255 = vadd.f32 0.0, %v254
  %256 = vmatprep.mubr.f32.mxu0 0.0
  %257 = vmatmul.mubr.f32.gmra.mrb[0].mxu0 %v47
  %v258 = vpop.f32.mrb[0].mxu0
  %v259 = vadd.f32 0.0, %v258
  %v260 = vpop.f32.mrb[0].mxu0
  %v261 = vadd.f32 0.0, %v260
  %262 = vmatprep.mubr.f32.mxu0 0.0
  %263 = vmatmul.mubr.f32.gmra.mrb[0].mxu0 %v48
  %v264 = vpop.f32.mrb[0].mxu0
  %v265 = vadd.f32 0.0, %v264
  %v266 = vpop.f32.mrb[0].mxu0
  %v267 = vadd.f32 0.0, %v266
  %268 = vmatprep.mubr.f32.mxu0 0.0
  %269 = vmatmul.mubr.f32.gmra.mrb[0].mxu0 %v49
  %v270 = vpop.f32.mrb[0].mxu0
  %v271 = vadd.f32 0.0, %v270
  %v272 = vpop.f32.mrb[0].mxu0
  %v273 = vadd.f32 0.0, %v272
  %274 = vdwg.mxu0
  %275 = vmatprep.subr.mxu0 %v53
  %276 = vmatpush1.msra.mxu0 %v52
  %277 = vmatprep.subr.mxu0 %v57
  %278 = vmatpush1.msra.mxu0 %v56
  %279 = vmatprep.subr.mxu0 %v61
  %280 = vmatpush1.msra.mxu0 %v60
  %281 = vmatprep.subr.mxu0 %v65
  %282 = vmatpush1.msra.mxu0 %v64
  %283 = vmatprep.subr.mxu0 %v69
  %284 = vmatpush1.msra.mxu0 %v68
  %285 = vmatprep.subr.mxu0 %v73
  %286 = vmatpush1.msra.mxu0 %v72
  %287 = vmatprep.subr.mxu0 %v77
  %288 = vmatpush1.msra.mxu0 %v76
  %289 = vmatprep.subr.mxu0 %v81
  %290 = vmatpush1.msra.mxu0 %v80
  %291 = vmatprep.subr.mxu0 %v85
  %292 = vmatpush1.msra.mxu0 %v84
  %293 = vmatprep.subr.mxu0 %v89
  %294 = vmatpush1.msra.mxu0 %v88
  %295 = vmatprep.subr.mxu0 %v93
  %296 = vmatpush1.msra.mxu0 %v92
  %297 = vmatprep.subr.mxu0 %v97
  %298 = vmatpush1.msra.mxu0 %v96
  %299 = vmatprep.subr.mxu0 %v101
  %300 = vmatpush1.msra.mxu0 %v100
  %301 = vmatprep.subr.mxu0 %v105
  %302 = vmatpush1.msra.mxu0 %v104
  %303 = vmatprep.subr.mxu0 %v109
  %304 = vmatpush1.msra.mxu0 %v108
  %305 = vmatprep.subr.mxu0 %v113
  %306 = vmatpush1.msra.mxu0 %v112
  %307 = vmatprep.subr.mxu0 0.0
  %308 = vmatpush1.msra.mxu0 0.0
  %309 = vmatprep.subr.mxu0 0.0
  %310 = vmatpush1.msra.mxu0 0.0
  %311 = vmatprep.subr.mxu0 0.0
  %312 = vmatpush1.msra.mxu0 0.0
  %313 = vmatprep.subr.mxu0 0.0
  %314 = vmatpush1.msra.mxu0 0.0
  %315 = vmatprep.subr.mxu0 0.0
  %316 = vmatpush1.msra.mxu0 0.0
  %317 = vmatprep.subr.mxu0 0.0
  %318 = vmatpush1.msra.mxu0 0.0
  %319 = vmatprep.subr.mxu0 0.0
  %320 = vmatpush1.msra.mxu0 0.0
  %321 = vmatprep.subr.mxu0 0.0
  %322 = vmatpush1.msra.mxu0 0.0
  %323 = vmatprep.subr.mxu0 0.0
  %324 = vmatpush1.msra.mxu0 0.0
  %325 = vmatprep.subr.mxu0 0.0
  %326 = vmatpush1.msra.mxu0 0.0
  %327 = vmatprep.subr.mxu0 0.0
  %328 = vmatpush1.msra.mxu0 0.0
  %329 = vmatprep.subr.mxu0 0.0
  %330 = vmatpush1.msra.mxu0 0.0
  %331 = vmatprep.subr.mxu0 0.0
  %332 = vmatpush1.msra.mxu0 0.0
  %333 = vmatprep.subr.mxu0 0.0
  %334 = vmatpush1.msra.mxu0 0.0
  %335 = vmatprep.subr.mxu0 0.0
  %336 = vmatpush1.msra.mxu0 0.0
  %337 = vmatprep.subr.mxu0 0.0
  %338 = vmatpush1.msra.mxu0 0.0
  %339 = vmatprep.mubr.f32.mxu0 0.0
  %340 = vmatmul.mubr.f32.gmra.mrb[0].mxu0 %v34
  %v341 = vpop.f32.mrb[0].mxu0
  %v342 = vadd.f32 0.0, %v341
  %v343 = vpop.f32.mrb[0].mxu0
  %v344 = vadd.f32 0.0, %v343
  %345 = vmatprep.mubr.f32.mxu0 0.0
  %346 = vmatmul.mubr.f32.gmra.mrb[0].mxu0 %v35
  %v347 = vpop.f32.mrb[0].mxu0
  %v348 = vadd.f32 0.0, %v347
  %v349 = vpop.f32.mrb[0].mxu0
  %v350 = vadd.f32 0.0, %v349
  %351 = vmatprep.mubr.f32.mxu0 0.0
  %352 = vmatmul.mubr.f32.gmra.mrb[0].mxu0 %v36
  %v353 = vpop.f32.mrb[0].mxu0
  %v354 = vadd.f32 0.0, %v353
  %v355 = vpop.f32.mrb[0].mxu0
  %v356 = vadd.f32 0.0, %v355
  %357 = vmatprep.mubr.f32.mxu0 0.0
  %358 = vmatmul.mubr.f32.gmra.mrb[0].mxu0 %v37
  %v359 = vpop.f32.mrb[0].mxu0
  %v360 = vadd.f32 0.0, %v359
  %v361 = vpop.f32.mrb[0].mxu0
  %v362 = vadd.f32 0.0, %v361
  %363 = vmatprep.mubr.f32.mxu0 0.0
  %364 = vmatmul.mubr.f32.gmra.mrb[0].mxu0 %v38
  %v365 = vpop.f32.mrb[0].mxu0
  %v366 = vadd.f32 0.0, %v365
  %v367 = vpop.f32.mrb[0].mxu0
  %v368 = vadd.f32 0.0, %v367
  %369 = vmatprep.mubr.f32.mxu0 0.0
  %370 = vmatmul.mubr.f32.gmra.mrb[0].mxu0 %v39
  %v371 = vpop.f32.mrb[0].mxu0
  %v372 = vadd.f32 0.0, %v371
  %v373 = vpop.f32.mrb[0].mxu0
  %v374 = vadd.f32 0.0, %v373
  %375 = vmatprep.mubr.f32.mxu0 0.0
  %376 = vmatmul.mubr.f32.gmra.mrb[0].mxu0 %v40
  %v377 = vpop.f32.mrb[0].mxu0
  %v378 = vadd.f32 0.0, %v377
  %v379 = vpop.f32.mrb[0].mxu0
  %v380 = vadd.f32 0.0, %v379
  %381 = vmatprep.mubr.f32.mxu0 0.0
  %382 = vmatmul.mubr.f32.gmra.mrb[0].mxu0 %v41
  %v383 = vpop.f32.mrb[0].mxu0
  %v384 = vadd.f32 0.0, %v383
  %v385 = vpop.f32.mrb[0].mxu0
  %v386 = vadd.f32 0.0, %v385
  %387 = vmatprep.mubr.f32.mxu0 0.0
  %388 = vmatmul.mubr.f32.gmra.mrb[0].mxu0 %v42
  %v389 = vpop.f32.mrb[0].mxu0
  %v390 = vadd.f32 0.0, %v389
  %v391 = vpop.f32.mrb[0].mxu0
  %v392 = vadd.f32 0.0, %v391
  %393 = vmatprep.mubr.f32.mxu0 0.0
  %394 = vmatmul.mubr.f32.gmra.mrb[0].mxu0 %v43
  %v395 = vpop.f32.mrb[0].mxu0
  %v396 = vadd.f32 0.0, %v395
  %v397 = vpop.f32.mrb[0].mxu0
  %v398 = vadd.f32 0.0, %v397
  %399 = vmatprep.mubr.f32.mxu0 0.0
  %400 = vmatmul.mubr.f32.gmra.mrb[0].mxu0 %v44
  %v401 = vpop.f32.mrb[0].mxu0
  %v402 = vadd.f32 0.0, %v401
  %v403 = vpop.f32.mrb[0].mxu0
  %v404 = vadd.f32 0.0, %v403
  %405 = vmatprep.mubr.f32.mxu0 0.0
  %406 = vmatmul.mubr.f32.gmra.mrb[0].mxu0 %v45
  %v407 = vpop.f32.mrb[0].mxu0
  %v408 = vadd.f32 0.0, %v407
  %v409 = vpop.f32.mrb[0].mxu0
  %v410 = vadd.f32 0.0, %v409
  %411 = vmatprep.mubr.f32.mxu0 0.0
  %412 = vmatmul.mubr.f32.gmra.mrb[0].mxu0 %v46
  %v413 = vpop.f32.mrb[0].mxu0
  %v414 = vadd.f32 0.0, %v413
  %v415 = vpop.f32.mrb[0].mxu0
  %v416 = vadd.f32 0.0, %v415
  %417 = vmatprep.mubr.f32.mxu0 0.0
  %418 = vmatmul.mubr.f32.gmra.mrb[0].mxu0 %v47
  %v419 = vpop.f32.mrb[0].mxu0
  %v420 = vadd.f32 0.0, %v419
  %v421 = vpop.f32.mrb[0].mxu0
  %v422 = vadd.f32 0.0, %v421
  %423 = vmatprep.mubr.f32.mxu0 0.0
  %424 = vmatmul.mubr.f32.gmra.mrb[0].mxu0 %v48
  %v425 = vpop.f32.mrb[0].mxu0
  %v426 = vadd.f32 0.0, %v425
  %v427 = vpop.f32.mrb[0].mxu0
  %v428 = vadd.f32 0.0, %v427
  %429 = vmatprep.mubr.f32.mxu0 0.0
  %430 = vmatmul.mubr.f32.gmra.mrb[0].mxu0 %v49
  %v431 = vpop.f32.mrb[0].mxu0
  %v432 = vadd.f32 0.0, %v431
  %v433 = vpop.f32.mrb[0].mxu0
  %v434 = vadd.f32 0.0, %v433
  %435 = vdwg.mxu0
  %v436 = vxor.u32 %v181, 2147483648
  %v437 = vxor.u32 %v183, 2147483648
  %v438 = vxor.u32 %v187, 2147483648
  %v439 = vxor.u32 %v189, 2147483648
  %v440 = vxor.u32 %v193, 2147483648
  %v441 = vxor.u32 %v195, 2147483648
  %v442 = vxor.u32 %v199, 2147483648
  %v443 = vxor.u32 %v201, 2147483648
  %v444 = vxor.u32 %v205, 2147483648
  %v445 = vxor.u32 %v207, 2147483648
  %v446 = vxor.u32 %v211, 2147483648
  %v447 = vxor.u32 %v213, 2147483648
  %v448 = vxor.u32 %v217, 2147483648
  %v449 = vxor.u32 %v219, 2147483648
  %v450 = vxor.u32 %v223, 2147483648
  %v451 = vxor.u32 %v225, 2147483648
  %v452 = vxor.u32 %v229, 2147483648
  %v453 = vxor.u32 %v231, 2147483648
  %v454 = vxor.u32 %v235, 2147483648
  %v455 = vxor.u32 %v237, 2147483648
  %v456 = vxor.u32 %v241, 2147483648
  %v457 = vxor.u32 %v243, 2147483648
  %v458 = vxor.u32 %v247, 2147483648
  %v459 = vxor.u32 %v249, 2147483648
  %v460 = vxor.u32 %v253, 2147483648
  %v461 = vxor.u32 %v255, 2147483648
  %v462 = vxor.u32 %v259, 2147483648
  %v463 = vxor.u32 %v261, 2147483648
  %v464 = vxor.u32 %v265, 2147483648
  %v465 = vxor.u32 %v267, 2147483648
  %v466 = vxor.u32 %v271, 2147483648
  %v467 = vxor.u32 %v273, 2147483648
  %v468 = vmul.f32 %v436, 1.442695
  %v469 = vpow.pop %v468
  %v470 = vmul.f32 %v437, 1.442695
  %v471 = vpow.pop %v470
  %v472 = vmul.f32 %v438, 1.442695
  %v473 = vpow.pop %v472
  %v474 = vmul.f32 %v439, 1.442695
  %v475 = vpow.pop %v474
  %v476 = vmul.f32 %v440, 1.442695
  %v477 = vpow.pop %v476
  %v478 = vmul.f32 %v441, 1.442695
  %v479 = vpow.pop %v478
  %v480 = vmul.f32 %v442, 1.442695
  %v481 = vpow.pop %v480
  %v482 = vmul.f32 %v443, 1.442695
  %v483 = vpow.pop %v482
  %v484 = vmul.f32 %v444, 1.442695
  %v485 = vpow.pop %v484
  %v486 = vmul.f32 %v445, 1.442695
  %v487 = vpow.pop %v486
  %v488 = vmul.f32 %v446, 1.442695
  %v489 = vpow.pop %v488
  %v490 = vmul.f32 %v447, 1.442695
  %v491 = vpow.pop %v490
  %v492 = vmul.f32 %v448, 1.442695
  %v493 = vpow.pop %v492
  %v494 = vmul.f32 %v449, 1.442695
  %v495 = vpow.pop %v494
  %v496 = vmul.f32 %v450, 1.442695
  %v497 = vpow.pop %v496
  %v498 = vmul.f32 %v451, 1.442695
  %v499 = vpow.pop %v498
  %v500 = vmul.f32 %v452, 1.442695
  %v501 = vpow.pop %v500
  %v502 = vmul.f32 %v453, 1.442695
  %v503 = vpow.pop %v502
  %v504 = vmul.f32 %v454, 1.442695
  %v505 = vpow.pop %v504
  %v506 = vmul.f32 %v455, 1.442695
  %v507 = vpow.pop %v506
  %v508 = vmul.f32 %v456, 1.442695
  %v509 = vpow.pop %v508
  %v510 = vmul.f32 %v457, 1.442695
  %v511 = vpow.pop %v510
  %v512 = vmul.f32 %v458, 1.442695
  %v513 = vpow.pop %v512
  %v514 = vmul.f32 %v459, 1.442695
  %v515 = vpow.pop %v514
  %v516 = vmul.f32 %v460, 1.442695
  %v517 = vpow.pop %v516
  %v518 = vmul.f32 %v461, 1.442695
  %v519 = vpow.pop %v518
  %v520 = vmul.f32 %v462, 1.442695
  %v521 = vpow.pop %v520
  %v522 = vmul.f32 %v463, 1.442695
  %v523 = vpow.pop %v522
  %v524 = vmul.f32 %v464, 1.442695
  %v525 = vpow.pop %v524
  %v526 = vmul.f32 %v465, 1.442695
  %v527 = vpow.pop %v526
  %v528 = vmul.f32 %v466, 1.442695
  %v529 = vpow.pop %v528
  %v530 = vmul.f32 %v467, 1.442695
  %v531 = vpow.pop %v530
  %v532 = vadd.f32 %v469, 1.0
  %v533 = vadd.f32 %v471, 1.0
  %v534 = vadd.f32 %v473, 1.0
  %v535 = vadd.f32 %v475, 1.0
  %v536 = vadd.f32 %v477, 1.0
  %v537 = vadd.f32 %v479, 1.0
  %v538 = vadd.f32 %v481, 1.0
  %v539 = vadd.f32 %v483, 1.0
  %v540 = vadd.f32 %v485, 1.0
  %v541 = vadd.f32 %v487, 1.0
  %v542 = vadd.f32 %v489, 1.0
  %v543 = vadd.f32 %v491, 1.0
  %v544 = vadd.f32 %v493, 1.0
  %v545 = vadd.f32 %v495, 1.0
  %v546 = vadd.f32 %v497, 1.0
  %v547 = vadd.f32 %v499, 1.0
  %v548 = vadd.f32 %v501, 1.0
  %v549 = vadd.f32 %v503, 1.0
  %v550 = vadd.f32 %v505, 1.0
  %v551 = vadd.f32 %v507, 1.0
  %v552 = vadd.f32 %v509, 1.0
  %v553 = vadd.f32 %v511, 1.0
  %v554 = vadd.f32 %v513, 1.0
  %v555 = vadd.f32 %v515, 1.0
  %v556 = vadd.f32 %v517, 1.0
  %v557 = vadd.f32 %v519, 1.0
  %v558 = vadd.f32 %v521, 1.0
  %v559 = vadd.f32 %v523, 1.0
  %v560 = vadd.f32 %v525, 1.0
  %v561 = vadd.f32 %v527, 1.0
  %v562 = vadd.f32 %v529, 1.0
  %v563 = vadd.f32 %v531, 1.0
  %v564 = vrcp.pop %v532
  %v565 = vmul.f32 1.0, %v564
  %v566 = vrcp.pop %v533
  %v567 = vmul.f32 1.0, %v566
  %v568 = vrcp.pop %v534
  %v569 = vmul.f32 1.0, %v568
  %v570 = vrcp.pop %v535
  %v571 = vmul.f32 1.0, %v570
  %v572 = vrcp.pop %v536
  %v573 = vmul.f32 1.0, %v572
  %v574 = vrcp.pop %v537
  %v575 = vmul.f32 1.0, %v574
  %v576 = vrcp.pop %v538
  %v577 = vmul.f32 1.0, %v576
  %v578 = vrcp.pop %v539
  %v579 = vmul.f32 1.0, %v578
  %v580 = vrcp.pop %v540
  %v581 = vmul.f32 1.0, %v580
  %v582 = vrcp.pop %v541
  %v583 = vmul.f32 1.0, %v582
  %v584 = vrcp.pop %v542
  %v585 = vmul.f32 1.0, %v584
  %v586 = vrcp.pop %v543
  %v587 = vmul.f32 1.0, %v586
  %v588 = vrcp.pop %v544
  %v589 = vmul.f32 1.0, %v588
  %v590 = vrcp.pop %v545
  %v591 = vmul.f32 1.0, %v590
  %v592 = vrcp.pop %v546
  %v593 = vmul.f32 1.0, %v592
  %v594 = vrcp.pop %v547
  %v595 = vmul.f32 1.0, %v594
  %v596 = vrcp.pop %v548
  %v597 = vmul.f32 1.0, %v596
  %v598 = vrcp.pop %v549
  %v599 = vmul.f32 1.0, %v598
  %v600 = vrcp.pop %v550
  %v601 = vmul.f32 1.0, %v600
  %v602 = vrcp.pop %v551
  %v603 = vmul.f32 1.0, %v602
  %v604 = vrcp.pop %v552
  %v605 = vmul.f32 1.0, %v604
  %v606 = vrcp.pop %v553
  %v607 = vmul.f32 1.0, %v606
  %v608 = vrcp.pop %v554
  %v609 = vmul.f32 1.0, %v608
  %v610 = vrcp.pop %v555
  %v611 = vmul.f32 1.0, %v610
  %v612 = vrcp.pop %v556
  %v613 = vmul.f32 1.0, %v612
  %v614 = vrcp.pop %v557
  %v615 = vmul.f32 1.0, %v614
  %v616 = vrcp.pop %v558
  %v617 = vmul.f32 1.0, %v616
  %v618 = vrcp.pop %v559
  %v619 = vmul.f32 1.0, %v618
  %v620 = vrcp.pop %v560
  %v621 = vmul.f32 1.0, %v620
  %v622 = vrcp.pop %v561
  %v623 = vmul.f32 1.0, %v622
  %v624 = vrcp.pop %v562
  %v625 = vmul.f32 1.0, %v624
  %v626 = vrcp.pop %v563
  %v627 = vmul.f32 1.0, %v626
  %v628 = vmul.f32 %v181, %v565
  %v629 = vmul.f32 %v183, %v567
  %v630 = vmul.f32 %v187, %v569
  %v631 = vmul.f32 %v189, %v571
  %v632 = vmul.f32 %v193, %v573
  %v633 = vmul.f32 %v195, %v575
  %v634 = vmul.f32 %v199, %v577
  %v635 = vmul.f32 %v201, %v579
  %v636 = vmul.f32 %v205, %v581
  %v637 = vmul.f32 %v207, %v583
  %v638 = vmul.f32 %v211, %v585
  %v639 = vmul.f32 %v213, %v587
  %v640 = vmul.f32 %v217, %v589
  %v641 = vmul.f32 %v219, %v591
  %v642 = vmul.f32 %v223, %v593
  %v643 = vmul.f32 %v225, %v595
  %v644 = vmul.f32 %v229, %v597
  %v645 = vmul.f32 %v231, %v599
  %v646 = vmul.f32 %v235, %v601
  %v647 = vmul.f32 %v237, %v603
  %v648 = vmul.f32 %v241, %v605
  %v649 = vmul.f32 %v243, %v607
  %v650 = vmul.f32 %v247, %v609
  %v651 = vmul.f32 %v249, %v611
  %v652 = vmul.f32 %v253, %v613
  %v653 = vmul.f32 %v255, %v615
  %v654 = vmul.f32 %v259, %v617
  %v655 = vmul.f32 %v261, %v619
  %v656 = vmul.f32 %v265, %v621
  %v657 = vmul.f32 %v267, %v623
  %v658 = vmul.f32 %v271, %v625
  %v659 = vmul.f32 %v273, %v627
  %v660 = vmul.f32 %v628, %v342
  %v661 = vmul.f32 %v629, %v344
  %v662 = vmul.f32 %v630, %v348
  %v663 = vmul.f32 %v631, %v350
  %v664 = vmul.f32 %v632, %v354
  %v665 = vmul.f32 %v633, %v356
  %v666 = vmul.f32 %v634, %v360
  %v667 = vmul.f32 %v635, %v362
  %v668 = vmul.f32 %v636, %v366
  %v669 = vmul.f32 %v637, %v368
  %v670 = vmul.f32 %v638, %v372
  %v671 = vmul.f32 %v639, %v374
  %v672 = vmul.f32 %v640, %v378
  %v673 = vmul.f32 %v641, %v380
  %v674 = vmul.f32 %v642, %v384
  %v675 = vmul.f32 %v643, %v386
  %v676 = vmul.f32 %v644, %v390
  %v677 = vmul.f32 %v645, %v392
  %v678 = vmul.f32 %v646, %v396
  %v679 = vmul.f32 %v647, %v398
  %v680 = vmul.f32 %v648, %v402
  %v681 = vmul.f32 %v649, %v404
  %v682 = vmul.f32 %v650, %v408
  %v683 = vmul.f32 %v651, %v410
  %v684 = vmul.f32 %v652, %v414
  %v685 = vmul.f32 %v653, %v416
  %v686 = vmul.f32 %v654, %v420
  %v687 = vmul.f32 %v655, %v422
  %v688 = vmul.f32 %v656, %v426
  %v689 = vmul.f32 %v657, %v428
  %v690 = vmul.f32 %v658, %v432
  %v691 = vmul.f32 %v659, %v434
  %v692 = vld [vmem:[#allocation2] sm:$0xff]
  %v693 = vld [vmem:[#allocation2 + $0x8] sm:$0xff]
  %v694 = vld [vmem:[#allocation2 + $0x10] sm:$0xff]
  %v695 = vld [vmem:[#allocation2 + $0x18] sm:$0xff]
  %v696 = vld [vmem:[#allocation2 + $0x20] sm:$0xff]
  %v697 = vld [vmem:[#allocation2 + $0x28] sm:$0xff]
  %v698 = vld [vmem:[#allocation2 + $0x30] sm:$0xff]
  %v699 = vld [vmem:[#allocation2 + $0x38] sm:$0xff]
  %v700 = vld [vmem:[#allocation2 + $0x40] sm:$0xff]
  %v701 = vld [vmem:[#allocation2 + $0x48] sm:$0xff]
  %v702 = vld [vmem:[#allocation2 + $0x50] sm:$0xff]
  %v703 = vld [vmem:[#allocation2 + $0x58] sm:$0xff]
  %v704 = vld [vmem:[#allocation2 + $0x60] sm:$0xff]
  %v705 = vld [vmem:[#allocation2 + $0x68] sm:$0xff]
  %v706 = vld [vmem:[#allocation2 + $0x70] sm:$0xff]
  %v707 = vld [vmem:[#allocation2 + $0x78] sm:$0xff]
  %v708 = vld [vmem:[%s2] sm:$0xff]
  %v709 = vld [vmem:[%s2 + $0x8] sm:$0xff]
  %v710 = vld [vmem:[%s2 + $0x10] sm:$0xff]
  %v711 = vld [vmem:[%s2 + $0x18] sm:$0xff]
  %v712 = vld [vmem:[%s2 + $0x20] sm:$0xff]
  %v713 = vld [vmem:[%s2 + $0x28] sm:$0xff]
  %v714 = vld [vmem:[%s2 + $0x30] sm:$0xff]
  %v715 = vld [vmem:[%s2 + $0x38] sm:$0xff]
  %v716 = vld [vmem:[%s2 + $0x40] sm:$0xff]
  %v717 = vld [vmem:[%s2 + $0x48] sm:$0xff]
  %v718 = vld [vmem:[%s2 + $0x50] sm:$0xff]
  %v719 = vld [vmem:[%s2 + $0x58] sm:$0xff]
  %v720 = vld [vmem:[%s2 + $0x60] sm:$0xff]
  %v721 = vld [vmem:[%s2 + $0x68] sm:$0xff]
  %v722 = vld [vmem:[%s2 + $0x70] sm:$0xff]
  %v723 = vld [vmem:[%s2 + $0x78] sm:$0xff]
  %v724 = vld [vmem:[%s2 + $0x80] sm:$0xff]
  %v725 = vld [vmem:[%s2 + $0x88] sm:$0xff]
  %v726 = vld [vmem:[%s2 + $0x90] sm:$0xff]
  %v727 = vld [vmem:[%s2 + $0x98] sm:$0xff]
  %v728 = vld [vmem:[%s2 + $0xa0] sm:$0xff]
  %v729 = vld [vmem:[%s2 + $0xa8] sm:$0xff]
  %v730 = vld [vmem:[%s2 + $0xb0] sm:$0xff]
  %v731 = vld [vmem:[%s2 + $0xb8] sm:$0xff]
  %v732 = vld [vmem:[%s2 + $0xc0] sm:$0xff]
  %v733 = vld [vmem:[%s2 + $0xc8] sm:$0xff]
  %v734 = vld [vmem:[%s2 + $0xd0] sm:$0xff]
  %v735 = vld [vmem:[%s2 + $0xd8] sm:$0xff]
  %v736 = vld [vmem:[%s2 + $0xe0] sm:$0xff]
  %v737 = vld [vmem:[%s2 + $0xe8] sm:$0xff]
  %v738 = vld [vmem:[%s2 + $0xf0] sm:$0xff]
  %v739 = vld [vmem:[%s2 + $0xf8] sm:$0xff]
  %740 = vmatprep.subr.mxu0 0.0
  %741 = vmatpush1.msra.mxu0 %v708
  %742 = vmatprep.subr.mxu0 0.0
  %743 = vmatpush1.msra.mxu0 %v709
  %744 = vmatprep.subr.mxu0 0.0
  %745 = vmatpush1.msra.mxu0 %v710
  %746 = vmatprep.subr.mxu0 0.0
  %747 = vmatpush1.msra.mxu0 %v711
  %748 = vmatprep.subr.mxu0 0.0
  %749 = vmatpush1.msra.mxu0 %v712
  %750 = vmatprep.subr.mxu0 0.0
  %751 = vmatpush1.msra.mxu0 %v713
  %752 = vmatprep.subr.mxu0 0.0
  %753 = vmatpush1.msra.mxu0 %v714
  %754 = vmatprep.subr.mxu0 0.0
  %755 = vmatpush1.msra.mxu0 %v715
  %756 = vmatprep.subr.mxu0 0.0
  %757 = vmatpush1.msra.mxu0 %v716
  %758 = vmatprep.subr.mxu0 0.0
  %759 = vmatpush1.msra.mxu0 %v717
  %760 = vmatprep.subr.mxu0 0.0
  %761 = vmatpush1.msra.mxu0 %v718
  %762 = vmatprep.subr.mxu0 0.0
  %763 = vmatpush1.msra.mxu0 %v719
  %764 = vmatprep.subr.mxu0 0.0
  %765 = vmatpush1.msra.mxu0 %v720
  %766 = vmatprep.subr.mxu0 0.0
  %767 = vmatpush1.msra.mxu0 %v721
  %768 = vmatprep.subr.mxu0 0.0
  %769 = vmatpush1.msra.mxu0 %v722
  %770 = vmatprep.subr.mxu0 0.0
  %771 = vmatpush1.msra.mxu0 %v723
  %772 = vmatprep.subr.mxu0 0.0
  %773 = vmatpush1.msra.mxu0 %v724
  %774 = vmatprep.subr.mxu0 0.0
  %775 = vmatpush1.msra.mxu0 %v725
  %776 = vmatprep.subr.mxu0 0.0
  %777 = vmatpush1.msra.mxu0 %v726
  %778 = vmatprep.subr.mxu0 0.0
  %779 = vmatpush1.msra.mxu0 %v727
  %780 = vmatprep.subr.mxu0 0.0
  %781 = vmatpush1.msra.mxu0 %v728
  %782 = vmatprep.subr.mxu0 0.0
  %783 = vmatpush1.msra.mxu0 %v729
  %784 = vmatprep.subr.mxu0 0.0
  %785 = vmatpush1.msra.mxu0 %v730
  %786 = vmatprep.subr.mxu0 0.0
  %787 = vmatpush1.msra.mxu0 %v731
  %788 = vmatprep.subr.mxu0 0.0
  %789 = vmatpush1.msra.mxu0 %v732
  %790 = vmatprep.subr.mxu0 0.0
  %791 = vmatpush1.msra.mxu0 %v733
  %792 = vmatprep.subr.mxu0 0.0
  %793 = vmatpush1.msra.mxu0 %v734
  %794 = vmatprep.subr.mxu0 0.0
  %795 = vmatpush1.msra.mxu0 %v735
  %796 = vmatprep.subr.mxu0 0.0
  %797 = vmatpush1.msra.mxu0 %v736
  %798 = vmatprep.subr.mxu0 0.0
  %799 = vmatpush1.msra.mxu0 %v737
  %800 = vmatprep.subr.mxu0 0.0
  %801 = vmatpush1.msra.mxu0 %v738
  %802 = vmatprep.subr.mxu0 0.0
  %803 = vmatpush1.msra.mxu0 %v739
  %804 = vmatprep.mubr.f32.mxu0 %v661
  %805 = vmatmul.mubr.f32.gmra.mrb[0].mxu0 %v660
  %v806 = vpop.f32.mrb[0].mxu0
  %v807 = vadd.f32 0.0, %v806
  %v808 = vpop.f32.mrb[0].mxu0
  %809 = vmatprep.mubr.f32.mxu0 %v663
  %810 = vmatmul.mubr.f32.gmra.mrb[0].mxu0 %v662
  %v811 = vpop.f32.mrb[0].mxu0
  %v812 = vadd.f32 0.0, %v811
  %v813 = vpop.f32.mrb[0].mxu0
  %814 = vmatprep.mubr.f32.mxu0 %v665
  %815 = vmatmul.mubr.f32.gmra.mrb[0].mxu0 %v664
  %v816 = vpop.f32.mrb[0].mxu0
  %v817 = vadd.f32 0.0, %v816
  %v818 = vpop.f32.mrb[0].mxu0
  %819 = vmatprep.mubr.f32.mxu0 %v667
  %820 = vmatmul.mubr.f32.gmra.mrb[0].mxu0 %v666
  %v821 = vpop.f32.mrb[0].mxu0
  %v822 = vadd.f32 0.0, %v821
  %v823 = vpop.f32.mrb[0].mxu0
  %824 = vmatprep.mubr.f32.mxu0 %v669
  %825 = vmatmul.mubr.f32.gmra.mrb[0].mxu0 %v668
  %v826 = vpop.f32.mrb[0].mxu0
  %v827 = vadd.f32 0.0, %v826
  %v828 = vpop.f32.mrb[0].mxu0
  %829 = vmatprep.mubr.f32.mxu0 %v671
  %830 = vmatmul.mubr.f32.gmra.mrb[0].mxu0 %v670
  %v831 = vpop.f32.mrb[0].mxu0
  %v832 = vadd.f32 0.0, %v831
  %v833 = vpop.f32.mrb[0].mxu0
  %834 = vmatprep.mubr.f32.mxu0 %v673
  %835 = vmatmul.mubr.f32.gmra.mrb[0].mxu0 %v672
  %v836 = vpop.f32.mrb[0].mxu0
  %v837 = vadd.f32 0.0, %v836
  %v838 = vpop.f32.mrb[0].mxu0
  %839 = vmatprep.mubr.f32.mxu0 %v675
  %840 = vmatmul.mubr.f32.gmra.mrb[0].mxu0 %v674
  %v841 = vpop.f32.mrb[0].mxu0
  %v842 = vadd.f32 0.0, %v841
  %v843 = vpop.f32.mrb[0].mxu0
  %844 = vmatprep.mubr.f32.mxu0 %v677
  %845 = vmatmul.mubr.f32.gmra.mrb[0].mxu0 %v676
  %v846 = vpop.f32.mrb[0].mxu0
  %v847 = vadd.f32 0.0, %v846
  %v848 = vpop.f32.mrb[0].mxu0
  %849 = vmatprep.mubr.f32.mxu0 %v679
  %850 = vmatmul.mubr.f32.gmra.mrb[0].mxu0 %v678
  %v851 = vpop.f32.mrb[0].mxu0
  %v852 = vadd.f32 0.0, %v851
  %v853 = vpop.f32.mrb[0].mxu0
  %854 = vmatprep.mubr.f32.mxu0 %v681
  %855 = vmatmul.mubr.f32.gmra.mrb[0].mxu0 %v680
  %v856 = vpop.f32.mrb[0].mxu0
  %v857 = vadd.f32 0.0, %v856
  %v858 = vpop.f32.mrb[0].mxu0
  %859 = vmatprep.mubr.f32.mxu0 %v683
  %860 = vmatmul.mubr.f32.gmra.mrb[0].mxu0 %v682
  %v861 = vpop.f32.mrb[0].mxu0
  %v862 = vadd.f32 0.0, %v861
  %v863 = vpop.f32.mrb[0].mxu0
  %864 = vmatprep.mubr.f32.mxu0 %v685
  %865 = vmatmul.mubr.f32.gmra.mrb[0].mxu0 %v684
  %v866 = vpop.f32.mrb[0].mxu0
  %v867 = vadd.f32 0.0, %v866
  %v868 = vpop.f32.mrb[0].mxu0
  %869 = vmatprep.mubr.f32.mxu0 %v687
  %870 = vmatmul.mubr.f32.gmra.mrb[0].mxu0 %v686
  %v871 = vpop.f32.mrb[0].mxu0
  %v872 = vadd.f32 0.0, %v871
  %v873 = vpop.f32.mrb[0].mxu0
  %874 = vmatprep.mubr.f32.mxu0 %v689
  %875 = vmatmul.mubr.f32.gmra.mrb[0].mxu0 %v688
  %v876 = vpop.f32.mrb[0].mxu0
  %v877 = vadd.f32 0.0, %v876
  %v878 = vpop.f32.mrb[0].mxu0
  %879 = vmatprep.mubr.f32.mxu0 %v691
  %880 = vmatmul.mubr.f32.gmra.mrb[0].mxu0 %v690
  %v881 = vpop.f32.mrb[0].mxu0
  %v882 = vadd.f32 0.0, %v881
  %v883 = vpop.f32.mrb[0].mxu0
  %884 = vdwg.mxu0
  %v885 = vadd.f32 %v692, %v807
  %v886 = vadd.f32 %v693, %v812
  %v887 = vadd.f32 %v694, %v817
  %v888 = vadd.f32 %v695, %v822
  %v889 = vadd.f32 %v696, %v827
  %v890 = vadd.f32 %v697, %v832
  %v891 = vadd.f32 %v698, %v837
  %v892 = vadd.f32 %v699, %v842
  %v893 = vadd.f32 %v700, %v847
  %v894 = vadd.f32 %v701, %v852
  %v895 = vadd.f32 %v702, %v857
  %v896 = vadd.f32 %v703, %v862
  %v897 = vadd.f32 %v704, %v867
  %v898 = vadd.f32 %v705, %v872
  %v899 = vadd.f32 %v706, %v877
  %v900 = vadd.f32 %v707, %v882
  %901 = vst [vmem:[#allocation2] sm:$0xff] %v885
  %902 = vst [vmem:[#allocation2 + $0x8] sm:$0xff] %v886
  %903 = vst [vmem:[#allocation2 + $0x10] sm:$0xff] %v887
  %904 = vst [vmem:[#allocation2 + $0x18] sm:$0xff] %v888
  %905 = vst [vmem:[#allocation2 + $0x20] sm:$0xff] %v889
  %906 = vst [vmem:[#allocation2 + $0x28] sm:$0xff] %v890
  %907 = vst [vmem:[#allocation2 + $0x30] sm:$0xff] %v891
  %908 = vst [vmem:[#allocation2 + $0x38] sm:$0xff] %v892
  %909 = vst [vmem:[#allocation2 + $0x40] sm:$0xff] %v893
  %910 = vst [vmem:[#allocation2 + $0x48] sm:$0xff] %v894
  %911 = vst [vmem:[#allocation2 + $0x50] sm:$0xff] %v895
  %912 = vst [vmem:[#allocation2 + $0x58] sm:$0xff] %v896
  %913 = vst [vmem:[#allocation2 + $0x60] sm:$0xff] %v897
  %914 = vst [vmem:[#allocation2 + $0x68] sm:$0xff] %v898
  %915 = vst [vmem:[#allocation2 + $0x70] sm:$0xff] %v899
  %916 = vst [vmem:[#allocation2 + $0x78] sm:$0xff] %v900
  // Predicated region
  $region18: #{_llama_ffn.1} parent=0 // pred_check
    %p917 = pneg %p14
  $region19: #{_llama_ffn.1} parent=0 // pred_check_branch
    %919 = sbr.rel (%p917) target = $region21
  $region20: #{_llama_ffn.1} parent=0 // pred_region
    %v920 = vld [vmem:[#allocation2] sm:$0xff]
    %v921 = vld [vmem:[#allocation2 + $0x8] sm:$0xff]
    %v922 = vld [vmem:[#allocation2 + $0x10] sm:$0xff]
    %v923 = vld [vmem:[#allocation2 + $0x18] sm:$0xff]
    %v924 = vld [vmem:[#allocation2 + $0x20] sm:$0xff]
    %v925 = vld [vmem:[#allocation2 + $0x28] sm:$0xff]
    %v926 = vld [vmem:[#allocation2 + $0x30] sm:$0xff]
    %v927 = vld [vmem:[#allocation2 + $0x38] sm:$0xff]
    %v928 = vld [vmem:[#allocation2 + $0x40] sm:$0xff]
    %v929 = vld [vmem:[#allocation2 + $0x48] sm:$0xff]
    %v930 = vld [vmem:[#allocation2 + $0x50] sm:$0xff]
    %v931 = vld [vmem:[#allocation2 + $0x58] sm:$0xff]
    %v932 = vld [vmem:[#allocation2 + $0x60] sm:$0xff]
    %v933 = vld [vmem:[#allocation2 + $0x68] sm:$0xff]
    %v934 = vld [vmem:[#allocation2 + $0x70] sm:$0xff]
    %v935 = vld [vmem:[#allocation2 + $0x78] sm:$0xff]
    %936 = vst [vmem:[%s3] sm:$0xff] %v920
    %937 = vst [vmem:[%s3 + $0x8] sm:$0xff] %v921
    %938 = vst [vmem:[%s3 + $0x10] sm:$0xff] %v922
    %939 = vst [vmem:[%s3 + $0x18] sm:$0xff] %v923
    %940 = vst [vmem:[%s3 + $0x20] sm:$0xff] %v924
    %941 = vst [vmem:[%s3 + $0x28] sm:$0xff] %v925
    %942 = vst [vmem:[%s3 + $0x30] sm:$0xff] %v926
    %943 = vst [vmem:[%s3 + $0x38] sm:$0xff] %v927
    %944 = vst [vmem:[%s3 + $0x40] sm:$0xff] %v928
    %945 = vst [vmem:[%s3 + $0x48] sm:$0xff] %v929
    %946 = vst [vmem:[%s3 + $0x50] sm:$0xff] %v930
    %947 = vst [vmem:[%s3 + $0x58] sm:$0xff] %v931
    %948 = vst [vmem:[%s3 + $0x60] sm:$0xff] %v932
    %949 = vst [vmem:[%s3 + $0x68] sm:$0xff] %v933
    %950 = vst [vmem:[%s3 + $0x70] sm:$0xff] %v934
    %951 = vst [vmem:[%s3 + $0x78] sm:$0xff] %v935
  $region21: #{_llama_ffn.1} parent=0 // pred_fallthru
    _
  // Predicated region
  $region22: #{_llama_ffn.1} parent=0 // pred_check
    _
  $region23: #{_llama_ffn.1} parent=0 // pred_check_branch
    %953 = sbr.rel (0) target = $region25
  $region24: #{_llama_ffn.1} parent=0 // pred_region
    _
  $region25: #{_llama_ffn.1} parent=0 // pred_fallthru
    _
  // Predicated region
  $region26: #{_llama_ffn.1} parent=0 // pred_check
    _
  $region27: #{_llama_ffn.1} parent=0 // pred_check_branch
    %955 = sbr.rel (0) target = $region29
  $region28: #{_llama_ffn.1} parent=0 // pred_region
    _
  $region29: #{_llama_ffn.1} parent=0 // pred_fallthru
    _

</llo_original>
